<compile_context>
chip_gen: v7x
topology: tpu7x:2x2x1
jax: 0.10.0
libtpu: 0.0.40
codegen_flags: <defaults>
</compile_context>

<pallas_src>
import jax
import jax.numpy as jnp
from jax.experimental import pallas as pl
from jax.experimental.pallas import tpu as pltpu


def _round_up(x, m):
    return (x + m - 1) // m * m


def _vmem_capacity_bytes():
    """Per-core VMEM capacity (64 MiB on v7x, 128 MiB on v5e/v6e); safe fallback."""
    cap = 64 * 1024 * 1024
    try:
        cap = int(pltpu.get_tpu_info().vmem_capacity_bytes)
    except Exception:
        pass
    return max(32 * 1024 * 1024, min(cap, 128 * 1024 * 1024))


def _insnption_kernel(x_ref, w_ref, shift_ref, o_ref):
    """One (batch, feature) tile of Mish(BN(Linear(x))) with bias+BN pre-folded."""
    x = x_ref[...]
    if x.dtype != jnp.bfloat16:            # cast at the MXU, not in the wrapper
        x = x.astype(jnp.bfloat16)
    w = w_ref[...]                          # (K, tn) bf16
    shift = shift_ref[...]                  # (1, tn) f32  (bias + BN folded)

    # Linear + folded BN affine; MXU accumulates in f32.
    y = jnp.dot(x, w, preferred_element_type=jnp.float32) + shift

    # Mish(y) = y * tanh(softplus(y)) = y * n / (n + 2),  n = e^y (e^y + 2).
    # Clamp the exp argument; for y > 20, n/(n+2) == 1 to f32 precision.
    e = jnp.exp(jnp.minimum(y, 20.0))
    n = e * (e + 2.0)
    o_ref[...] = (y * n * pl.reciprocal(n + 2.0, approx=True)).astype(o_ref.dtype)


def fold_insnption_params(w_t, b, bn_gamma, bn_beta, bn_mean, bn_var,
                          *, eps=1e-5, weight_dtype=jnp.bfloat16):
    """Fold Linear bias + eval-mode BatchNorm into W' and a per-feature shift.

    Call once at model init (outside the per-step path).
      BN(x@W + b) = x @ (W * scale) + ((b - mean) * scale + beta)
    Returns (w_fold (K, N) weight_dtype, shift (1, N) f32).
    """
    inv_std = jax.lax.rsqrt(bn_var.astype(jnp.float32) + eps)
    scale = bn_gamma.astype(jnp.float32) * inv_std
    shift = (b.astype(jnp.float32) - bn_mean.astype(jnp.float32)) * scale \
        + bn_beta.astype(jnp.float32)
    w_fold = (w_t.astype(jnp.float32) * scale[None, :]).astype(weight_dtype)
    return w_fold, shift[None, :]


def insnption_layer(x, w_fold, shift, *, out_dtype=jnp.bfloat16, tm=None):
    """Pallas forward for InSNPtion_Layer with layer_act='Mish', finalLayer=False.

    x      : (M, K)        activations (f32 or bf16; cast to bf16 in-kernel)
    w_fold : (K, N)        folded weight from fold_insnption_params (bf16)
    shift  : (1, N)  f32   folded bias + BN shift
    """
    M, K = x.shape
    Kw, N = w_fold.shape
    assert Kw == K and shift.shape == (1, N)

    x_bytes = jnp.dtype(x.dtype).itemsize
    w_bytes = jnp.dtype(w_fold.dtype).itemsize
    out_bytes = jnp.dtype(out_dtype).itemsize

    cap = _vmem_capacity_bytes()
    budget = int(cap * 0.7)

    # ---- Feature-axis strategy: resident weight vs. lane-dense N tiling. ----
    w_total = K * N * w_bytes
    weight_resident = w_total <= budget // 3
    if weight_resident:
        tn = N
        w_footprint = w_total                       # single copy, no double-buffer
    else:
        tn = min(2048, _round_up(N, 128))
        while 2 * K * tn * w_bytes > budget // 2 and tn > 128:
            tn //= 2
        w_footprint = 2 * K * tn * w_bytes          # double-buffered weight tile

    # ---- Batch tile from the remaining VMEM budget. ----
    # 2x (x tile) + 2x (out tile) + ~3 f32 elementwise temporaries per row.
    per_row = 2 * K * x_bytes + 2 * tn * out_bytes + 3 * tn * 4
    tm_max = max(8, (budget - w_footprint) // per_row)
    if tm is None:
        tm = 512
    tm = max(8, min(int(tm), int(tm_max), 512))
    if M <= 8:
        tm = M                                       # block == full dim (legal)
    else:
        tm = min(tm, _round_up(M, 8))
        tm = max(8, (tm // 8) * 8)
        # v7x megacore: prefer >= 2 batch grid steps so both TCs get work.
        tm = min(tm, _round_up((M + 1) // 2, 8))
    m_grid = pl.cdiv(M, tm)

    # ---- Grid / specs. ----
    if weight_resident:
        grid = (m_grid,)
        in_specs = [
            pl.BlockSpec((tm, K), lambda i: (i, 0)),                      # x batch tile
            pl.BlockSpec(memory_space=pltpu.MemorySpace.VMEM),            # W' resident, 1 copy
            pl.BlockSpec(memory_space=pltpu.MemorySpace.VMEM),            # shift resident
        ]
        out_specs = pl.BlockSpec((tm, N), lambda i: (i, 0))
        dims = ("parallel",)
        w_reads = 1
    else:
        n_grid = pl.cdiv(N, tn)
        grid = (m_grid, n_grid)
        in_specs = [
            pl.BlockSpec((tm, K), lambda i, j: (i, 0)),
            pl.BlockSpec((K, tn), lambda i, j: (0, j)),
            pl.BlockSpec((1, tn), lambda i, j: (0, j)),
        ]
        out_specs = pl.BlockSpec((tm, tn), lambda i, j: (i, j))
        dims = ("parallel", "parallel")
        w_reads = m_grid

    cost = pl.CostEstimate(
        flops=2 * M * K * N,
        transcendentals=2 * M * N,
        bytes_accessed=(M * K * x_bytes + w_reads * K * N * w_bytes
                        + N * 4 + M * N * out_bytes),
    )

    return pl.pallas_call(
        _insnption_kernel,
        out_shape=jax.ShapeDtypeStruct((M, N), out_dtype),
        grid_spec=pltpu.PrefetchScalarGridSpec(
            num_scalar_prefetch=0,
            grid=grid,
            in_specs=in_specs,
            out_specs=out_specs,
        ),
        compiler_params=pltpu.CompilerParams(
            dimension_semantics=dims,
            vmem_limit_bytes=int(cap * 0.9),
        ),
        cost_estimate=cost,
    )(x, w_fold, shift)


def reference(x, w_fold, shift):
    """Pure-JAX reference on the same folded (bf16) weights."""
    xr = x.astype(jnp.bfloat16).astype(jnp.float32)
    y = xr @ w_fold.astype(jnp.float32) + shift.astype(jnp.float32)
    sp = jnp.logaddexp(y, 0.0)          # stable softplus
    return y * jnp.tanh(sp)


if __name__ == "__main__":
    key = jax.random.PRNGKey(0)
    k_x, k_w, k_b, k_g, k_be, k_m, k_v = jax.random.split(key, 7)

    batch, input_dim, output_dim = 16, 32, 24

    x = jax.random.normal(k_x, (batch, input_dim), dtype=jnp.float32)

    # Deterministic parameter init mirroring the module's __init__:
    #   nn.Linear weight -> kaiming_normal_ (fan_in, gain=sqrt(2))
    #   nn.Linear bias   -> default uniform(-1/sqrt(fan_in), 1/sqrt(fan_in))
    std = (2.0 / input_dim) ** 0.5
    w = std * jax.random.normal(k_w, (output_dim, input_dim), dtype=jnp.float32)
    bound = 1.0 / (input_dim ** 0.5)
    b = jax.random.uniform(k_b, (output_dim,), minval=-bound, maxval=bound,
                           dtype=jnp.float32)

    # Non-trivial eval-mode BatchNorm1d running stats / affine.
    bn_gamma = jax.random.uniform(k_g, (output_dim,), minval=0.5, maxval=1.5,
                                  dtype=jnp.float32)
    bn_beta = 0.1 * jax.random.normal(k_be, (output_dim,), dtype=jnp.float32)
    bn_mean = 0.1 * jax.random.normal(k_m, (output_dim,), dtype=jnp.float32)
    bn_var = jax.random.uniform(k_v, (output_dim,), minval=0.5, maxval=1.5,
                                dtype=jnp.float32)

    # Fold once at "init" (outside the per-call path).
    w_fold, shift = fold_insnption_params(w.T, b, bn_gamma, bn_beta, bn_mean, bn_var)
    w_fold, shift = jax.block_until_ready((w_fold, shift))

    out = insnption_layer(x, w_fold, shift)
    out = jax.block_until_ready(out)

    assert out.shape == (batch, output_dim)
    assert out.dtype == jnp.bfloat16

    ref = reference(x, w_fold, shift)
    outf = out.astype(jnp.float32)
    err = jnp.max(jnp.abs(outf - ref))
    # bf16 output + approx reciprocal => bf16-level agreement with the f32 ref.
    assert jnp.allclose(outf, ref, atol=5e-2, rtol=5e-2), f"max abs err {err}"

    print("KERNEL_OK")
</pallas_src>

<mosaic_0001>
module attributes {stable_mosaic.version = 11 : i64} {
  func.func @_insnption_kernel(%arg0: i32, %arg1: memref<8x32xf32, #tpu.memory_space<vmem>>, %arg2: memref<32x24xbf16, #tpu.memory_space<vmem>>, %arg3: memref<1x24xf32, #tpu.memory_space<vmem>>, %arg4: memref<8x24xbf16, #tpu.memory_space<vmem>>) attributes {dimension_semantics = [#tpu.dimension_semantics<parallel>], iteration_bounds = array<i64: 2>, scalar_prefetch = 0 : i64, scratch_operands = 0 : i64, tpu.core_type = #tpu.core_type<tc>, window_params = [{transform_indices = @transform_0, window_bounds = array<i64: 8, 32>}, {pipeline_mode = #tpu.pipeline_mode<synchronous>, transform_indices = @transform_1, window_bounds = array<i64: 32, 24>}, {pipeline_mode = #tpu.pipeline_mode<synchronous>, transform_indices = @transform_2, window_bounds = array<i64: 1, 24>}, {transform_indices = @transform_3, window_bounds = array<i64: 8, 24>}]} {
    %c0 = arith.constant 0 : index
    %c0_0 = arith.constant 0 : index
    %0 = vector.load %arg1[%c0, %c0_0] : memref<8x32xf32, #tpu.memory_space<vmem>>, vector<8x32xf32>
    %1 = arith.truncf %0 : vector<8x32xf32> to vector<8x32xbf16>
    %c0_1 = arith.constant 0 : index
    %c0_2 = arith.constant 0 : index
    %2 = vector.load %arg2[%c0_1, %c0_2] : memref<32x24xbf16, #tpu.memory_space<vmem>>, vector<32x24xbf16>
    %c0_3 = arith.constant 0 : index
    %c0_4 = arith.constant 0 : index
    %3 = vector.load %arg3[%c0_3, %c0_4] : memref<1x24xf32, #tpu.memory_space<vmem>>, vector<1x24xf32>
    %cst = arith.constant dense<0.000000e+00> : vector<8x24xf32>
    %4 = tpu.matmul %1, %2, %cst {dimension_numbers = #tpu.dot_dimension_numbers<[1], [0], [0], [1], [0, 0, 1, 1], [], []>} : vector<8x32xbf16>, vector<32x24xbf16>, vector<8x24xf32> -> vector<8x24xf32>
    %5 = vector.broadcast %3 : vector<1x24xf32> to vector<8x24xf32>
    %6 = arith.addf %4, %5 : vector<8x24xf32>
    %cst_5 = arith.constant 2.000000e+01 : f32
    %7 = vector.broadcast %cst_5 : f32 to vector<8x24xf32>
    %8 = arith.minimumf %6, %7 : vector<8x24xf32>
    %9 = math.exp %8 : vector<8x24xf32>
    %cst_6 = arith.constant 2.000000e+00 : f32
    %10 = vector.broadcast %cst_6 : f32 to vector<8x24xf32>
    %11 = arith.addf %9, %10 : vector<8x24xf32>
    %12 = arith.mulf %9, %11 : vector<8x24xf32>
    %13 = arith.mulf %6, %12 : vector<8x24xf32>
    %cst_7 = arith.constant 2.000000e+00 : f32
    %14 = vector.broadcast %cst_7 : f32 to vector<8x24xf32>
    %15 = arith.addf %12, %14 : vector<8x24xf32>
    %16 = tpu.reciprocal %15 {approx = true} : vector<8x24xf32> -> vector<8x24xf32>
    %17 = arith.mulf %13, %16 : vector<8x24xf32>
    %18 = arith.truncf %17 : vector<8x24xf32> to vector<8x24xbf16>
    %c0_8 = arith.constant 0 : index
    %c0_9 = arith.constant 0 : index
    %19 = vector.load %arg4[%c0_8, %c0_9] : memref<8x24xbf16, #tpu.memory_space<vmem>>, vector<8x24xbf16>
    tpu.vector_store %arg4[%c0_8, %c0_9], %18 {strides = array<i32>} : memref<8x24xbf16, #tpu.memory_space<vmem>>, vector<8x24xbf16>,
    return
  }
  func.func @transform_0(%arg0: i32) -> (i32, i32) {
    %c0_i32 = arith.constant 0 : i32
    %c0_i32_0 = arith.constant 0 : i32
    return %arg0, %c0_i32 : i32, i32
  }
  func.func @transform_1(%arg0: i32) -> (i32, i32) {
    %c0_i32 = arith.constant 0 : i32
    %c0_i32_0 = arith.constant 0 : i32
    %c0_i32_1 = arith.constant 0 : i32
    return %c0_i32, %c0_i32_0 : i32, i32
  }
  func.func @transform_2(%arg0: i32) -> (i32, i32) {
    %c0_i32 = arith.constant 0 : i32
    %c0_i32_0 = arith.constant 0 : i32
    %c0_i32_1 = arith.constant 0 : i32
    return %c0_i32, %c0_i32_0 : i32, i32
  }
  func.func @transform_3(%arg0: i32) -> (i32, i32) {
    %c0_i32 = arith.constant 0 : i32
    %c0_i32_0 = arith.constant 0 : i32
    return %arg0, %c0_i32 : i32, i32
  }
}

</mosaic_0001>

<llo_original>
// kernel: tpu_custom_call.1
$region0: #{tpu_custom_call.1}
  #allocation0 [shape = 'u32[]', space=smem, size = 0x4, offset = 0x4, fixed_abs, tag = 'smem constant byte address 0x4 - core index']
  #allocation1 [shape = 'u32[144,128]{1,0:T(1,128)}', space=vmem, size = 0x12000, scoped, tag = 'internal scratch']
  %s0 = inlined_call_operand.vmem [shape: f32[16,32], index: 0, kind: input, shape index: {}]
  %s1 = inlined_call_operand.vmem [shape: bf16[32,24], index: 1, kind: input, shape index: {}]
  %s2 = inlined_call_operand.vmem [shape: f32[1,24], index: 2, kind: input, shape index: {}]
  %s3 = inlined_call_operand.hbm [shape: bf16[16,24], index: 3, kind: output, shape index: {}]
  %s4 = sld [smem:[#allocation0]]
  $region45: #{tpu_custom_call.1} parent=0
    _
  %s6 = ssub.s32 1, %s4
  %s7 = scalar_select 0, %s6, %s4
  $region1: #{tpu_custom_call.1} parent=0
    #allocation2 [shape = 'u8[4096]{0}', space=vmem, size = 0x1000, scoped, tag = 'output window, operand 0']
    #allocation3 [shape = 's32[2]{0}', space=sflag, size = 0x8, scoped, tag = 'scoped memory for tpu_custom_call.1']
    %8 = vsyncpa [#allocation3], 0
    %s9 = scalar_lea.sflag [#allocation3], 1
    %10 = vsyncpa %s9, 0
    loop: start=0, step=1, limit=4
    $region2: #{tpu_custom_call.1} parent=1 // loop_pre_header
      _
    $region3: #{tpu_custom_call.1} parent=1 // loop_header
      %s12 = sphi 0, %s16
      %p13 = scmp.ge.s32.totalorder %s12, 4
      %s22 = sphi 0, %s24
      %s25 = sphi 0, %s22
      %s26 = sphi 0, %s25
      %s42 = sphi 0, %s26
      %s46 = sphi 0, %s46
      %s48 = sphi 0, %s46
      %s49 = sphi 0, %s48
      %s63 = sphi 0, %s49
      %s67 = sphi 0, %s67
      %s69 = sphi 0, %s67
      %s70 = sphi 0, %s69
      %s84 = sphi 0, %s70
      %s90 = sphi 0, %s92
      %s93 = sphi 0, %s90
      %s94 = sphi 0, %s93
      %s110 = sphi 0, %s94
    $region4: #{tpu_custom_call.1} parent=1 // loop_header_branch
      %15 = sbr.rel (%p13) target = $region8
    $region5: #{tpu_custom_call.1} parent=1 // loop_body
      %s17 = ssub.s32 %s12, 1
      %s18 = ssub.s32 %s12, 2
      %s19 = sadd.s32 %s12, 1
      %s20 = ssub.s32 %s12, %s19
      %p21 = scmp.eq.s32.totalorder %s20, 0
      %s23 = sadd.s32 %s22, 1
      %s24 = scalar_select %p21, %s22, %s23
      %p27 = pneg %p21
      %p28 = scmp.eq.s32.totalorder %s12, 1
      %p29 = por %p27, %p28
      %p30 = scmp.ne.s32.totalorder %s22, %s25
      %p31 = scmp.eq.s32.totalorder %s12, 0
      %p32 = por %p30, %p31
      %p33 = scmp.ne.s32.totalorder %s22, %s25
      %p34 = scmp.eq.s32.totalorder %s17, 1
      %p35 = por %p33, %p34
      %p36 = scmp.ne.s32.totalorder %s25, %s26
      %p37 = scmp.eq.s32.totalorder %s17, 0
      %p38 = por %p36, %p37
      %p39 = scmp.ne.s32.totalorder %s25, %s26
      %p40 = scmp.eq.s32.totalorder %s18, 1
      %p41 = por %p39, %p40
      %p43 = scmp.ne.s32.totalorder %s26, %s42
      %p44 = scmp.eq.s32.totalorder %s18, 0
      %p45 = por %p43, %p44
      %s47 = sadd.s32 %s46, 1
      %p50 = scmp.eq.s32.totalorder %s12, 1
      %p51 = scmp.ne.s32.totalorder %s46, %s48
      %p52 = scmp.eq.s32.totalorder %s12, 0
      %p53 = por %p51, %p52
      %p54 = scmp.ne.s32.totalorder %s46, %s48
      %p55 = scmp.eq.s32.totalorder %s17, 1
      %p56 = por %p54, %p55
      %p57 = scmp.ne.s32.totalorder %s48, %s49
      %p58 = scmp.eq.s32.totalorder %s17, 0
      %p59 = por %p57, %p58
      %p60 = scmp.ne.s32.totalorder %s48, %s49
      %p61 = scmp.eq.s32.totalorder %s18, 1
      %p62 = por %p60, %p61
      %p64 = scmp.ne.s32.totalorder %s49, %s63
      %p65 = scmp.eq.s32.totalorder %s18, 0
      %p66 = por %p64, %p65
      %s68 = sadd.s32 %s67, 1
      %p71 = scmp.eq.s32.totalorder %s12, 1
      %p72 = scmp.ne.s32.totalorder %s67, %s69
      %p73 = scmp.eq.s32.totalorder %s12, 0
      %p74 = por %p72, %p73
      %p75 = scmp.ne.s32.totalorder %s67, %s69
      %p76 = scmp.eq.s32.totalorder %s17, 1
      %p77 = por %p75, %p76
      %p78 = scmp.ne.s32.totalorder %s69, %s70
      %p79 = scmp.eq.s32.totalorder %s17, 0
      %p80 = por %p78, %p79
      %p81 = scmp.ne.s32.totalorder %s69, %s70
      %p82 = scmp.eq.s32.totalorder %s18, 1
      %p83 = por %p81, %p82
      %p85 = scmp.ne.s32.totalorder %s70, %s84
      %p86 = scmp.eq.s32.totalorder %s18, 0
      %p87 = por %p85, %p86
      %s88 = ssub.s32 %s12, %s19
      %p89 = scmp.eq.s32.totalorder %s88, 0
      %s91 = sadd.s32 %s90, 1
      %s92 = scalar_select %p89, %s90, %s91
      %p95 = pneg %p89
      %p96 = scmp.eq.s32.totalorder %s12, 1
      %p97 = por %p95, %p96
      %p98 = scmp.ne.s32.totalorder %s90, %s93
      %p99 = scmp.eq.s32.totalorder %s12, 0
      %p100 = por %p98, %p99
      %p101 = scmp.ne.s32.totalorder %s90, %s93
      %p102 = scmp.eq.s32.totalorder %s17, 1
      %p103 = por %p101, %p102
      %p104 = scmp.ne.s32.totalorder %s93, %s94
      %p105 = scmp.eq.s32.totalorder %s17, 0
      %p106 = por %p104, %p105
      %p107 = scmp.ne.s32.totalorder %s93, %s94
      %p108 = scmp.eq.s32.totalorder %s18, 1
      %p109 = por %p107, %p108
      %p111 = scmp.ne.s32.totalorder %s94, %s110
      %p112 = scmp.eq.s32.totalorder %s18, 0
      %p113 = por %p111, %p112
      %p114 = scmp.le.s32.totalorder 1, %s12
      %p115 = scmp.lt.s32.totalorder %s12, 3
      %p116 = pnand %p114, %p115
      %p117 = pneg %p116
      // Predicated region
      $region9: #{tpu_custom_call.1} parent=5 // pred_check
        _
      $region10: #{tpu_custom_call.1} parent=5 // pred_check_branch
        %119 = sbr.rel (%p116) target = $region12
      $region11: #{tpu_custom_call.1} parent=5 // pred_region
        %s120 = ssub.s32 %s12, 1
        // Predicated region
        $region13: #{tpu_custom_call.1} parent=11 // pred_check
          %p121 = pneg %p59
        $region14: #{tpu_custom_call.1} parent=11 // pred_check_branch
          %123 = sbr.rel (%p121) target = $region16
        $region15: #{tpu_custom_call.1} parent=11 // pred_region
          _
        $region16: #{tpu_custom_call.1} parent=11 // pred_fallthru
          _
        // Predicated region
        $region17: #{tpu_custom_call.1} parent=11 // pred_check
          %p124 = pneg %p80
        $region18: #{tpu_custom_call.1} parent=11 // pred_check_branch
          %126 = sbr.rel (%p124) target = $region20
        $region19: #{tpu_custom_call.1} parent=11 // pred_region
          _
        $region20: #{tpu_custom_call.1} parent=11 // pred_fallthru
          _
      $region12: #{tpu_custom_call.1} parent=5 // pred_fallthru
        _
      %p127 = scmp.lt.s32.totalorder %s12, 2
      // Predicated region
      $region21: #{tpu_custom_call.1} parent=5 // pred_check
        %p128 = pneg %p127
      $region22: #{tpu_custom_call.1} parent=5 // pred_check_branch
        %130 = sbr.rel (%p128) target = $region24
      $region23: #{tpu_custom_call.1} parent=5 // pred_region
        // Predicated region
        $region25: #{tpu_custom_call.1} parent=23 // pred_check
          %p131 = pneg %p32
        $region26: #{tpu_custom_call.1} parent=23 // pred_check_branch
          %133 = sbr.rel (%p131) target = $region28
        $region27: #{tpu_custom_call.1} parent=23 // pred_region
          %p134 = scmp.lt.s32.totalorder %s12, 1
          %s135 = scalar_select %p134, %s12, 1
          %s136 = smul.addr %s135, 8
          %s137 = scalar_lea.vmem %s0, %s136
        $region28: #{tpu_custom_call.1} parent=23 // pred_fallthru
          _
      $region24: #{tpu_custom_call.1} parent=5 // pred_fallthru
        _
      %p138 = scmp.le.s32.totalorder 1, %s12
      %p139 = scmp.lt.s32.totalorder %s12, 3
      %p140 = pnand %p138, %p139
      %p141 = pneg %p140
      // Predicated region
      $region29: #{tpu_custom_call.1} parent=5 // pred_check
        _
      $region30: #{tpu_custom_call.1} parent=5 // pred_check_branch
        %143 = sbr.rel (%p140) target = $region32
      $region31: #{tpu_custom_call.1} parent=5 // pred_region
        %s144 = ssub.s32 %s12, 1
        %p145 = scmp.lt.s32.totalorder %s17, 1
        %s146 = scalar_select %p145, %s17, 1
        %s147 = smul.addr %s146, 8
        %s148 = scalar_lea.vmem %s0, %s147
        %p149 = pneg %p38
        %p150 = pneg %p35
        %p151 = pneg %p59
        %p152 = pneg %p56
        %p153 = pneg %p80
        %p154 = pneg %p77
        %p155 = pneg %p106
        %p156 = pneg %p103
        %s157 = sand.u32 %s93, 1
        %s158 = scalar_lea.sflag [#allocation3], %s157
        %s159 = sand.u32 %s93, 1
        %s160 = smul.addr %s159, 4
        %s161 = scalar_lea.vmem [#allocation2], %s160
        %p162 = scmp.lt.s32.totalorder %s17, 1
        %s163 = scalar_select %p162, %s17, 1
        %s164 = smul.addr %s163, 8
        %s165 = scalar_lea.vmem %s0, %s164
        %v167 = vld [vmem:[%s165] sm:$0xff]
        %v168 = vpack.c.bf16 %v167, %v167
        %v169 = vld [vmem:[%s1] sm:$0xf]
        %v170 = vld [vmem:[%s1 + $0x4] sm:$0xf]
        %v171 = vld [vmem:[%s1 + $0x8] sm:$0xf]
        %v172 = vld [vmem:[%s1 + $0xc] sm:$0xf]
        %v173 = vld [vmem:[%s2] sm:$0x1]
        %v175 = vlaneseq
        %v176 = vshrl.u32 %v175, 7
        %v177 = vsub.s32 0, %v176
        %v178 = vrot.slane %v173, %v177
        %v184 = vunpack.c.l.b16 %v169
        %v185 = vunpack.c.l.b16 %v170
        %v186 = vunpack.c.l.b16 %v171
        %v187 = vunpack.c.l.b16 %v172
        %v188 = vpack.c.b16 %v185, %v184
        %v189 = vpack.c.b16 %v187, %v186
        %vm192 = vcmask 261120
        %v194 = vsel %vm192, %v168, 0
        %196 = vmatprep.subr.bf16.mxu0 0
        %197 = vmatpush1.bf16.msra.mxu0 %v188
        %198 = vmatprep.subr.bf16.mxu0 0
        %199 = vmatpush1.bf16.msra.mxu0 %v189
        %200 = vmatprep.subr.bf16.mxu0 0
        %201 = vmatpush1.bf16.msra.mxu0 0
        %202 = vmatprep.subr.bf16.mxu0 0
        %203 = vmatpush1.bf16.msra.mxu0 0
        %204 = vmatprep.subr.bf16.mxu0 0
        %205 = vmatpush1.bf16.msra.mxu0 0
        %206 = vmatprep.subr.bf16.mxu0 0
        %207 = vmatpush1.bf16.msra.mxu0 0
        %208 = vmatprep.subr.bf16.mxu0 0
        %209 = vmatpush1.bf16.msra.mxu0 0
        %210 = vmatprep.subr.bf16.mxu0 0
        %211 = vmatpush1.bf16.msra.mxu0 0
        %212 = vmatprep.subr.bf16.mxu0 0
        %213 = vmatpush1.bf16.msra.mxu0 0
        %214 = vmatprep.subr.bf16.mxu0 0
        %215 = vmatpush1.bf16.msra.mxu0 0
        %216 = vmatprep.subr.bf16.mxu0 0
        %217 = vmatpush1.bf16.msra.mxu0 0
        %218 = vmatprep.subr.bf16.mxu0 0
        %219 = vmatpush1.bf16.msra.mxu0 0
        %220 = vmatprep.subr.bf16.mxu0 0
        %221 = vmatpush1.bf16.msra.mxu0 0
        %222 = vmatprep.subr.bf16.mxu0 0
        %223 = vmatpush1.bf16.msra.mxu0 0
        %224 = vmatprep.subr.bf16.mxu0 0
        %225 = vmatpush1.bf16.msra.mxu0 0
        %226 = vmatprep.subr.bf16.mxu0 0
        %227 = vmatpush1.bf16.msra.mxu0 0
        %228 = vmatprep.mubr.bf16.mxu0 0
        %229 = vmatmul.mubr.bf16.gmra.mrb[0].mxu0 %v194
        %v230 = vpop.f32.mrb[0].mxu0
        %v231 = vadd.f32 %v178, %v230
        %v232 = vpop.f32.mrb[0].mxu0
        %v233 = vpop.f32.mrb[0].mxu0
        %v234 = vpop.f32.mrb[0].mxu0
        %235 = vdwg.mxu0
        %v236 = vmin.f32 %v231, 20.0
        %v237 = vmul.f32 %v236, 1.442695
        %v238 = vpow.pop %v237
        %v239 = vadd.f32 %v238, 2.0
        %v240 = vmul.f32 %v238, %v239
        %v241 = vmul.f32 %v231, %v240
        %v242 = vadd.f32 %v240, 2.0
        %v243 = vrcp.pop %v242
        %v244 = vmul.f32 %v241, %v243
        %v245 = vpack.c.bf16 %v244, %v244
        %vm246 = vcmask 191488
        %247 = vst.msk [vmem:[%s161] sm:$0xf] %vm246, %v245
        %s248 = sand.u32 %s93, 1
        %s249 = scalar_lea.sflag [#allocation3], %s248
        %s250 = sand.u32 %s93, 1
        %s251 = smul.addr %s250, 4
        %s252 = scalar_lea.vmem [#allocation2], %s251
        // Predicated region
        $region33: #{tpu_custom_call.1} parent=31 // pred_check
          %p253 = pneg %p103
        $region34: #{tpu_custom_call.1} parent=31 // pred_check_branch
          %255 = sbr.rel (%p253) target = $region36
        $region35: #{tpu_custom_call.1} parent=31 // pred_region
          %s257 = ssub.s32 64, 64
          %258 = vsyncadd %s249, %s257
          %s259 = smul.addr %s17, 64
          %s260 = scalar_lea.hbm %s3, %s259
          %s262 = sshll.u32 %s252, 4
          %s263 = int_to_ptr.vmem [resolvable:$true] %s262
          %265 = dma.vmem_to_hbm [thread:$0]  %s263, 64, %s260, %s249
        $region36: #{tpu_custom_call.1} parent=31 // pred_fallthru
          _
      $region32: #{tpu_custom_call.1} parent=5 // pred_fallthru
        _
      %p266 = scmp.le.s32.totalorder 2, %s12
      // Predicated region
      $region37: #{tpu_custom_call.1} parent=5 // pred_check
        %p267 = pneg %p266
      $region38: #{tpu_custom_call.1} parent=5 // pred_check_branch
        %269 = sbr.rel (%p267) target = $region40
      $region39: #{tpu_custom_call.1} parent=5 // pred_region
        %s270 = ssub.s32 %s12, 2
        // Predicated region
        $region41: #{tpu_custom_call.1} parent=39 // pred_check
          %p271 = pneg %p109
        $region42: #{tpu_custom_call.1} parent=39 // pred_check_branch
          %273 = sbr.rel (%p271) target = $region44
        $region43: #{tpu_custom_call.1} parent=39 // pred_region
          %s274 = sand.u32 %s94, 1
          %s275 = scalar_lea.sflag [#allocation3], %s274
          %s276 = sand.u32 %s94, 1
          %s277 = smul.addr %s276, 4
          %s278 = scalar_lea.vmem [#allocation2], %s277
          %279 = dma.done %s275, 64
        $region44: #{tpu_custom_call.1} parent=39 // pred_fallthru
          _
      $region40: #{tpu_custom_call.1} parent=5 // pred_fallthru
        _
    $region6: #{tpu_custom_call.1} parent=1 // loop_footer
      %s16 = sadd.s32 1, %s12
    $region7: #{tpu_custom_call.1} parent=1 // loop_footer_branch
      %11 = sbr.rel target = $region3
    $region8: #{tpu_custom_call.1} parent=1 // loop_exit
      _
    %280 = vsyncpa [#allocation3], 1
    %s281 = scalar_lea.sflag [#allocation3], 1
    %282 = vsyncpa %s281, 1

</llo_original>
